<compile_context>
chip_gen: v5e
topology: v5e:2x2
jax: 0.10.0
libtpu: 0.0.40
codegen_flags: <defaults>
</compile_context>

<pallas_src>
import jax
import jax.numpy as jnp
from jax.experimental import pallas as pl
from jax.experimental.pallas import tpu as pltpu


def _make_attention_kernel(K):
    def kernel(w_ref, *refs):
        # w_ref: (1, C)   refs[:K]: K x (TN, C)   refs[K]: (TN, C) output
        x_refs = refs[:K]
        o_ref = refs[K]

        w = w_ref[...].astype(jnp.float32)  # (1, C); sublane-broadcast per use is cheap

        # Load + cast each input exactly once; slices stay live for the weighted sum.
        xs = [x_ref[...].astype(jnp.float32) for x_ref in x_refs]     # K x (TN, C)

        # Per-k scores: VPU multiply + XLU lane reduce.
        # NOTE: Linear bias is omitted on purpose: softmax over K is shift-invariant,
        # so a scalar added to every score has zero effect on the output.
        scores = [jnp.sum(x * w, axis=-1, keepdims=True) for x in xs]  # K x (TN, 1)

        # Softmax over K, unrolled (K is tiny and static).
        m = scores[0]
        for s in scores[1:]:
            m = jnp.maximum(m, s)
        ps = [jnp.exp(s - m) for s in scores]
        denom = ps[0]
        for p in ps[1:]:
            denom = denom + p
        inv = 1.0 / denom                      # exact; only a (TN, 1) vector

        # Weighted sum over K, reusing the already-cast slices (single pass over x).
        acc = (ps[0] * inv) * xs[0]
        for k in range(1, K):
            acc = acc + (ps[k] * inv) * xs[k]
        o_ref[...] = acc.astype(o_ref.dtype)

    return kernel


def attention_forward(inputs, weight, bias=None, *, vmem_block_budget=8 * 1024 * 1024):
    """inputs: list of K arrays [N, C]; weight: [C] (Linear(C,1).weight squeezed);
    bias: scalar (accepted for API parity; softmax shift-invariance makes it a no-op)."""
    del bias  # mathematically cancels in the softmax; see kernel comment.

    K = len(inputs)
    N, C = inputs[0].shape
    dtype = inputs[0].dtype
    itemsize = jnp.dtype(dtype).itemsize
    pack = {4: 8, 2: 16, 1: 32}.get(itemsize, 8)   # sublane packing per dtype

    # Rows per block from the VMEM budget: K input blocks + 1 output block, double-buffered.
    bytes_per_row = 2 * (K + 1) * C * itemsize
    tn_max = max(pack, (vmem_block_budget // bytes_per_row) // pack * pack)
    tn_max = min(tn_max, 16384)

    if N <= tn_max:
        # Single full-extent block: always a legal block shape, zero padding/copies.
        tn, grid, pad = N, 1, 0
    else:
        # Exact tiling: largest divisor of N that is a multiple of `pack` and <= tn_max.
        tn = 0
        t = tn_max
        while t >= pack:
            if N % t == 0:
                tn = t
                break
            t -= pack
        if tn >= max(pack, tn_max // 8):
            grid, pad = N // tn, 0          # grid >= 2 here (N > tn_max >= tn) -> v7x megacore
        else:
            # TODO(synk): in-kernel boundary masking would avoid this full-copy pad.
            grid = pl.cdiv(N, tn_max)
            tn = pl.cdiv(pl.cdiv(N, grid), pack) * pack
            grid = pl.cdiv(N, tn)
            pad = grid * tn - N

    xs = list(inputs)
    if pad:
        xs = [jnp.pad(x, ((0, pad), (0, 0))) for x in xs]   # padded rows -> finite junk, sliced off
    Np = N + pad

    w2d = weight.reshape(1, C).astype(jnp.float32)

    # VMEM limit derived from the actual blocks + f32 temporaries (safe on v7x's 64 MiB).
    block_bytes = 2 * (K + 1) * C * tn * itemsize
    temp_bytes = (K + 2) * C * tn * 4
    vmem_limit = int(min(max(block_bytes + temp_bytes + (2 << 20), 8 << 20), 32 << 20))

    out = pl.pallas_call(
        _make_attention_kernel(K),
        out_shape=jax.ShapeDtypeStruct((Np, C), dtype),
        grid_spec=pltpu.PrefetchScalarGridSpec(
            num_scalar_prefetch=0,
            grid=(grid,),
            in_specs=[pl.BlockSpec((1, C), lambda i: (0, 0))]
                     + [pl.BlockSpec((tn, C), lambda i: (i, 0)) for _ in range(K)],
            out_specs=pl.BlockSpec((tn, C), lambda i: (i, 0)),
        ),
        compiler_params=pltpu.CompilerParams(
            dimension_semantics=("parallel",),
            vmem_limit_bytes=vmem_limit,
        ),
    )(w2d, *xs)

    return out[:N] if pad else out


def attention_reference(inputs, weight, bias):
    stacked = jnp.stack(inputs, axis=1)                            # [N, K, C]
    scores = jnp.einsum("nkc,c->nk", stacked, weight) + bias       # [N, K]
    p = jax.nn.softmax(scores, axis=1)                             # softmax over K
    return jnp.einsum("nk,nkc->nc", p, stacked)                    # [N, C]


if __name__ == "__main__":
    key = jax.random.PRNGKey(0)
    k_in, k_w, k_b = jax.random.split(key, 3)

    # K "views" of [N, C] node features, consistent with the module (in_channels=32).
    K, C = 3, 32
    bound = 1.0 / (C ** 0.5)
    weight = jax.random.uniform(k_w, (C,), jnp.float32, -bound, bound)
    bias = jax.random.uniform(k_b, (), jnp.float32, -bound, bound)

    # (N, vmem_block_budget): default budget for the small cases; a tiny budget on the
    # larger cases to exercise the pipelined exact-tiling path and the padding fallback.
    cases = [
        (16, None),        # tiny, single full block
        (100, None),       # rows not a multiple of 8, single full block
        (3072, 1 << 20),   # exact tiling: tn=1024, grid=3, zero padding
        (3070, 1 << 20),   # awkward N -> padding fallback path
    ]

    for N, budget in cases:
        inputs = [jax.random.normal(jax.random.fold_in(k_in, 1000 * N + i),
                                    (N, C), jnp.float32) for i in range(K)]
        kwargs = {} if budget is None else {"vmem_block_budget": budget}
        out = attention_forward(inputs, weight, bias, **kwargs)
        out = jax.block_until_ready(out)

        ref = attention_reference(inputs, weight, bias)
        assert out.shape == (N, C)
        assert jnp.allclose(out, ref, atol=1e-4, rtol=1e-4), f"mismatch vs reference (N={N})"

    print("KERNEL_OK")
</pallas_src>

<mosaic_0001>
module attributes {stable_mosaic.version = 11 : i64} {
  func.func @kernel(%arg0: i32, %arg1: memref<1x32xf32, #tpu.memory_space<vmem>>, %arg2: memref<16x32xf32, #tpu.memory_space<vmem>>, %arg3: memref<16x32xf32, #tpu.memory_space<vmem>>, %arg4: memref<16x32xf32, #tpu.memory_space<vmem>>, %arg5: memref<16x32xf32, #tpu.memory_space<vmem>>) attributes {dimension_semantics = [#tpu.dimension_semantics<parallel>], iteration_bounds = array<i64: 1>, scalar_prefetch = 0 : i64, scratch_operands = 0 : i64, tpu.core_type = #tpu.core_type<tc>, window_params = [{pipeline_mode = #tpu.pipeline_mode<synchronous>, transform_indices = @transform_0, window_bounds = array<i64: 1, 32>}, {transform_indices = @transform_1, window_bounds = array<i64: 16, 32>}, {transform_indices = @transform_2, window_bounds = array<i64: 16, 32>}, {transform_indices = @transform_3, window_bounds = array<i64: 16, 32>}, {transform_indices = @transform_4, window_bounds = array<i64: 16, 32>}]} {
    %c0 = arith.constant 0 : index
    %c0_0 = arith.constant 0 : index
    %0 = vector.load %arg1[%c0, %c0_0] : memref<1x32xf32, #tpu.memory_space<vmem>>, vector<1x32xf32>
    %c0_1 = arith.constant 0 : index
    %c0_2 = arith.constant 0 : index
    %1 = vector.load %arg2[%c0_1, %c0_2] : memref<16x32xf32, #tpu.memory_space<vmem>>, vector<16x32xf32>
    %c0_3 = arith.constant 0 : index
    %c0_4 = arith.constant 0 : index
    %2 = vector.load %arg3[%c0_3, %c0_4] : memref<16x32xf32, #tpu.memory_space<vmem>>, vector<16x32xf32>
    %c0_5 = arith.constant 0 : index
    %c0_6 = arith.constant 0 : index
    %3 = vector.load %arg4[%c0_5, %c0_6] : memref<16x32xf32, #tpu.memory_space<vmem>>, vector<16x32xf32>
    %4 = vector.broadcast %0 : vector<1x32xf32> to vector<16x32xf32>
    %5 = arith.mulf %1, %4 : vector<16x32xf32>
    %cst = arith.constant dense<0.000000e+00> : vector<16xf32>
    %6 = vector.multi_reduction <add>, %5, %cst [1] : vector<16x32xf32> to vector<16xf32>
    %7 = vector.shape_cast %6 : vector<16xf32> to vector<16x1xf32>
    %8 = vector.broadcast %0 : vector<1x32xf32> to vector<16x32xf32>
    %9 = arith.mulf %2, %8 : vector<16x32xf32>
    %cst_7 = arith.constant dense<0.000000e+00> : vector<16xf32>
    %10 = vector.multi_reduction <add>, %9, %cst_7 [1] : vector<16x32xf32> to vector<16xf32>
    %11 = vector.shape_cast %10 : vector<16xf32> to vector<16x1xf32>
    %12 = vector.broadcast %0 : vector<1x32xf32> to vector<16x32xf32>
    %13 = arith.mulf %3, %12 : vector<16x32xf32>
    %cst_8 = arith.constant dense<0.000000e+00> : vector<16xf32>
    %14 = vector.multi_reduction <add>, %13, %cst_8 [1] : vector<16x32xf32> to vector<16xf32>
    %15 = vector.shape_cast %14 : vector<16xf32> to vector<16x1xf32>
    %16 = arith.maximumf %7, %11 : vector<16x1xf32>
    %17 = arith.maximumf %16, %15 : vector<16x1xf32>
    %18 = arith.subf %7, %17 : vector<16x1xf32>
    %19 = math.exp %18 : vector<16x1xf32>
    %20 = arith.subf %11, %17 : vector<16x1xf32>
    %21 = math.exp %20 : vector<16x1xf32>
    %22 = arith.subf %15, %17 : vector<16x1xf32>
    %23 = math.exp %22 : vector<16x1xf32>
    %24 = arith.addf %19, %21 : vector<16x1xf32>
    %25 = arith.addf %24, %23 : vector<16x1xf32>
    %cst_9 = arith.constant 1.000000e+00 : f32
    %26 = vector.broadcast %cst_9 : f32 to vector<16x1xf32>
    %27 = arith.divf %26, %25 : vector<16x1xf32>
    %28 = arith.mulf %19, %27 : vector<16x1xf32>
    %29 = vector.broadcast %28 : vector<16x1xf32> to vector<16x32xf32>
    %30 = arith.mulf %29, %1 : vector<16x32xf32>
    %31 = arith.mulf %21, %27 : vector<16x1xf32>
    %32 = vector.broadcast %31 : vector<16x1xf32> to vector<16x32xf32>
    %33 = arith.mulf %32, %2 : vector<16x32xf32>
    %34 = arith.addf %30, %33 : vector<16x32xf32>
    %35 = arith.mulf %23, %27 : vector<16x1xf32>
    %36 = vector.broadcast %35 : vector<16x1xf32> to vector<16x32xf32>
    %37 = arith.mulf %36, %3 : vector<16x32xf32>
    %38 = arith.addf %34, %37 : vector<16x32xf32>
    %c0_10 = arith.constant 0 : index
    %c0_11 = arith.constant 0 : index
    %39 = vector.load %arg5[%c0_10, %c0_11] : memref<16x32xf32, #tpu.memory_space<vmem>>, vector<16x32xf32>
    tpu.vector_store %arg5[%c0_10, %c0_11], %38 {strides = array<i32>} : memref<16x32xf32, #tpu.memory_space<vmem>>, vector<16x32xf32>,
    return
  }
  func.func @transform_0(%arg0: i32) -> (i32, i32) {
    %c0_i32 = arith.constant 0 : i32
    %c0_i32_0 = arith.constant 0 : i32
    %c0_i32_1 = arith.constant 0 : i32
    return %c0_i32, %c0_i32_0 : i32, i32
  }
  func.func @transform_1(%arg0: i32) -> (i32, i32) {
    %c0_i32 = arith.constant 0 : i32
    %c0_i32_0 = arith.constant 0 : i32
    return %arg0, %c0_i32 : i32, i32
  }
  func.func @transform_2(%arg0: i32) -> (i32, i32) {
    %c0_i32 = arith.constant 0 : i32
    %c0_i32_0 = arith.constant 0 : i32
    return %arg0, %c0_i32 : i32, i32
  }
  func.func @transform_3(%arg0: i32) -> (i32, i32) {
    %c0_i32 = arith.constant 0 : i32
    %c0_i32_0 = arith.constant 0 : i32
    return %arg0, %c0_i32 : i32, i32
  }
  func.func @transform_4(%arg0: i32) -> (i32, i32) {
    %c0_i32 = arith.constant 0 : i32
    %c0_i32_0 = arith.constant 0 : i32
    return %arg0, %c0_i32 : i32, i32
  }
}

</mosaic_0001>

<llo_original>
// kernel: tpu_custom_call.1
$region0: #{tpu_custom_call.1}
  #allocation0 [shape = 'u32[]', space=smem, size = 0x4, offset = 0x4, fixed_abs, tag = 'smem constant byte address 0x4 - core index']
  #allocation1 [shape = 'u32[72,128]{1,0:T(1,128)}', space=vmem, size = 0x9000, scoped, tag = 'internal scratch']
  %s0 = inlined_call_operand.hbm [shape: f32[1,32], index: 0, kind: input, shape index: {}]
  %s1 = inlined_call_operand.hbm [shape: f32[16,32], index: 1, kind: input, shape index: {}]
  %s2 = inlined_call_operand.hbm [shape: f32[16,32], index: 2, kind: input, shape index: {}]
  %s3 = inlined_call_operand.hbm [shape: f32[16,32], index: 3, kind: input, shape index: {}]
  %s4 = inlined_call_operand.hbm [shape: f32[16,32], index: 4, kind: output, shape index: {}]
  %s5 = sld [smem:[#allocation0]]
  $region42: #{tpu_custom_call.1} parent=0
    _
  %s7 = ssub.s32 1, %s5
  %s8 = scalar_select 0, %s7, %s5
  $region1: #{tpu_custom_call.1} parent=0
    #allocation2 [shape = 'u8[512]{0}', space=vmem, size = 0x400, scoped, tag = 'input window, operand 0, single buffered']
    #allocation3 [shape = 's32[1]{0}', space=sflag, size = 0x4, scoped, tag = 'scoped memory for tpu_custom_call.1']
    #allocation4 [shape = 's32[1]{0}', space=sflag, size = 0x4, scoped, tag = 'scoped memory for tpu_custom_call.1']
    #allocation5 [shape = 'u8[8192]{0}', space=vmem, size = 0x2000, scoped, tag = 'input window, operand 1, single buffered']
    #allocation6 [shape = 's32[1]{0}', space=sflag, size = 0x4, scoped, tag = 'scoped memory for tpu_custom_call.1']
    #allocation7 [shape = 'u8[8192]{0}', space=vmem, size = 0x2000, scoped, tag = 'input window, operand 2, single buffered']
    #allocation8 [shape = 'u8[8192]{0}', space=vmem, size = 0x2000, scoped, tag = 'input window, operand 3, single buffered']
    #allocation9 [shape = 's32[1]{0}', space=sflag, size = 0x4, scoped, tag = 'scoped memory for tpu_custom_call.1']
    #allocation10 [shape = 'u8[8192]{0}', space=vmem, size = 0x2000, scoped, tag = 'output window, operand 0, single buffered']
    %9 = vsyncpa [#allocation3], 0
    %10 = vsyncpa [#allocation6], 0
    %11 = vsyncpa [#allocation9], 0
    %12 = vsyncpa [#allocation4], 0
    // Predicated region
    $region2: #{tpu_custom_call.1} parent=1 // pred_check
      _
    $region3: #{tpu_custom_call.1} parent=1 // pred_check_branch
      %14 = sbr.rel (0) target = $region5
    $region4: #{tpu_custom_call.1} parent=1 // pred_region
      %16 = vsyncadd [#allocation3], 0
      %s18 = sshll.u32 %s0, 4
      %s19 = int_to_ptr.hbm [resolvable:$true] %s18
      %s20 = sshll.u32 [#allocation2], 4
      %s21 = int_to_ptr.vmem [resolvable:$true] %s20
      %23 = dma.hbm_to_vmem [thread:$0]  %s19, 16, %s21, [#allocation3]
    $region5: #{tpu_custom_call.1} parent=1 // pred_fallthru
      _
    // Predicated region
    $region6: #{tpu_custom_call.1} parent=1 // pred_check
      _
    $region7: #{tpu_custom_call.1} parent=1 // pred_check_branch
      %25 = sbr.rel (0) target = $region9
    $region8: #{tpu_custom_call.1} parent=1 // pred_region
      %27 = vsyncadd [#allocation6], 0
      %s28 = sshll.u32 %s1, 4
      %s29 = int_to_ptr.hbm [resolvable:$true] %s28
      %s30 = sshll.u32 [#allocation5], 4
      %s31 = int_to_ptr.vmem [resolvable:$true] %s30
      %36 = dma.hbm_to_vmem [thread:$0]  %s29, 256, %s31, [#allocation6], 128, 128, 8
    $region9: #{tpu_custom_call.1} parent=1 // pred_fallthru
      _
    // Predicated region
    $region10: #{tpu_custom_call.1} parent=1 // pred_check
      _
    $region11: #{tpu_custom_call.1} parent=1 // pred_check_branch
      %38 = sbr.rel (0) target = $region13
    $region12: #{tpu_custom_call.1} parent=1 // pred_region
      %40 = vsyncadd [#allocation6], 0
      %s41 = sshll.u32 %s2, 4
      %s42 = int_to_ptr.hbm [resolvable:$true] %s41
      %s43 = sshll.u32 [#allocation7], 4
      %s44 = int_to_ptr.vmem [resolvable:$true] %s43
      %49 = dma.hbm_to_vmem [thread:$0]  %s42, 256, %s44, [#allocation6], 128, 128, 8
    $region13: #{tpu_custom_call.1} parent=1 // pred_fallthru
      _
    // Predicated region
    $region14: #{tpu_custom_call.1} parent=1 // pred_check
      _
    $region15: #{tpu_custom_call.1} parent=1 // pred_check_branch
      %51 = sbr.rel (0) target = $region17
    $region16: #{tpu_custom_call.1} parent=1 // pred_region
      %53 = vsyncadd [#allocation9], 0
      %s54 = sshll.u32 %s3, 4
      %s55 = int_to_ptr.hbm [resolvable:$true] %s54
      %s56 = sshll.u32 [#allocation8], 4
      %s57 = int_to_ptr.vmem [resolvable:$true] %s56
      %62 = dma.hbm_to_vmem [thread:$0]  %s55, 256, %s57, [#allocation9], 128, 128, 8
    $region17: #{tpu_custom_call.1} parent=1 // pred_fallthru
      _
    // Predicated region
    $region18: #{tpu_custom_call.1} parent=1 // pred_check
      _
    $region19: #{tpu_custom_call.1} parent=1 // pred_check_branch
      %64 = sbr.rel (0) target = $region21
    $region20: #{tpu_custom_call.1} parent=1 // pred_region
      %66 = dma.done [#allocation3], 16
    $region21: #{tpu_custom_call.1} parent=1 // pred_fallthru
      _
    // Predicated region
    $region22: #{tpu_custom_call.1} parent=1 // pred_check
      _
    $region23: #{tpu_custom_call.1} parent=1 // pred_check_branch
      %68 = sbr.rel (0) target = $region25
    $region24: #{tpu_custom_call.1} parent=1 // pred_region
      %70 = dma.done [#allocation6], 256
    $region25: #{tpu_custom_call.1} parent=1 // pred_fallthru
      _
    // Predicated region
    $region26: #{tpu_custom_call.1} parent=1 // pred_check
      _
    $region27: #{tpu_custom_call.1} parent=1 // pred_check_branch
      %72 = sbr.rel (0) target = $region29
    $region28: #{tpu_custom_call.1} parent=1 // pred_region
      %74 = dma.done [#allocation6], 256
    $region29: #{tpu_custom_call.1} parent=1 // pred_fallthru
      _
    // Predicated region
    $region30: #{tpu_custom_call.1} parent=1 // pred_check
      _
    $region31: #{tpu_custom_call.1} parent=1 // pred_check_branch
      %76 = sbr.rel (0) target = $region33
    $region32: #{tpu_custom_call.1} parent=1 // pred_region
      %78 = dma.done [#allocation9], 256
    $region33: #{tpu_custom_call.1} parent=1 // pred_fallthru
      _
    %v79 = vld [vmem:[#allocation2] sm:$0x1]
    %v80 = vld [vmem:[#allocation5] sm:$0xff]
    %v81 = vld [vmem:[#allocation5 + $0x8] sm:$0xff]
    %v82 = vld [vmem:[#allocation7] sm:$0xff]
    %v83 = vld [vmem:[#allocation7 + $0x8] sm:$0xff]
    %v84 = vld [vmem:[#allocation8] sm:$0xff]
    %v85 = vld [vmem:[#allocation8 + $0x8] sm:$0xff]
    %v87 = vperm.slane %v79, 0
    %v89 = vmul.f32 %v80, %v87
    %v90 = vmul.f32 %v81, %v87
    %vm91 = vcmask 261120
    %v92 = vsel %vm91, %v89, 0.0
    %93 = vadd.xlane.f32.xlu0 %v92
    %v94 = vpop.xlane.xlu0 %93
    %v95 = vsel %vm91, %v90, 0.0
    %96 = vadd.xlane.f32.xlu0 %v95
    %v97 = vpop.xlane.xlu0 %96
    %v98 = vmul.f32 %v82, %v87
    %v99 = vmul.f32 %v83, %v87
    %v100 = vsel %vm91, %v98, 0.0
    %101 = vadd.xlane.f32.xlu0 %v100
    %v102 = vpop.xlane.xlu0 %101
    %v103 = vsel %vm91, %v99, 0.0
    %104 = vadd.xlane.f32.xlu0 %v103
    %v105 = vpop.xlane.xlu0 %104
    %v106 = vmul.f32 %v84, %v87
    %v107 = vmul.f32 %v85, %v87
    %v108 = vsel %vm91, %v106, 0.0
    %109 = vadd.xlane.f32.xlu0 %v108
    %v110 = vpop.xlane.xlu0 %109
    %v111 = vsel %vm91, %v107, 0.0
    %112 = vadd.xlane.f32.xlu0 %v111
    %v113 = vpop.xlane.xlu0 %112
    %v114 = vmax.f32 %v94, %v102
    %v115 = vmax.f32 %v97, %v105
    %v116 = vmax.f32 %v114, %v110
    %v117 = vmax.f32 %v115, %v113
    %v118 = vsub.f32 %v94, %v116
    %v119 = vsub.f32 %v97, %v117
    %v120 = vmul.f32 %v118, 1.442695
    %v121 = vpow.pop %v120
    %v122 = vmul.f32 %v119, 1.442695
    %v123 = vpow.pop %v122
    %v124 = vsub.f32 %v102, %v116
    %v125 = vsub.f32 %v105, %v117
    %v126 = vmul.f32 %v124, 1.442695
    %v127 = vpow.pop %v126
    %v128 = vmul.f32 %v125, 1.442695
    %v129 = vpow.pop %v128
    %v130 = vsub.f32 %v110, %v116
    %v131 = vsub.f32 %v113, %v117
    %v132 = vmul.f32 %v130, 1.442695
    %v133 = vpow.pop %v132
    %v134 = vmul.f32 %v131, 1.442695
    %v135 = vpow.pop %v134
    %v136 = vadd.f32 %v121, %v127
    %v137 = vadd.f32 %v123, %v129
    %v138 = vadd.f32 %v136, %v133
    %v139 = vadd.f32 %v137, %v135
    %v140 = vrcp.pop %v138
    %v141 = vmul.f32 %v138, %v140
    %v142 = vsub.f32 1.0, %v141
    %v143 = vmul.f32 %v140, %v142
    %v144 = vadd.f32 %v140, %v143
    %vm145 = vweird.f32 %v138
    %vm146 = vweird.f32 %v140
    %vm147 = vmor %vm145, %vm146
    %v148 = vsel %vm147, %v140, %v144
    %v149 = vand.u32 2147483647, %v138
    %vm150 = vcmp.eq.f32.partialorder %v149, 8.507059e+37
    %v151 = vand.u32 %v138, 2147483648
    %v152 = vor.u32 1.1754944e-38, %v151
    %v153 = vsel %vm150, %v152, %v148
    %v154 = vmul.f32 1.0, %v153
    %v155 = vrcp.pop %v139
    %v156 = vmul.f32 %v139, %v155
    %v157 = vsub.f32 1.0, %v156
    %v158 = vmul.f32 %v155, %v157
    %v159 = vadd.f32 %v155, %v158
    %vm160 = vweird.f32 %v139
    %vm161 = vweird.f32 %v155
    %vm162 = vmor %vm160, %vm161
    %v163 = vsel %vm162, %v155, %v159
    %v164 = vand.u32 2147483647, %v139
    %vm165 = vcmp.eq.f32.partialorder %v164, 8.507059e+37
    %v166 = vand.u32 %v139, 2147483648
    %v167 = vor.u32 1.1754944e-38, %v166
    %v168 = vsel %vm165, %v167, %v163
    %v169 = vmul.f32 1.0, %v168
    %v170 = vmul.f32 %v121, %v154
    %v171 = vmul.f32 %v123, %v169
    %v172 = vmul.f32 %v170, %v80
    %v173 = vmul.f32 %v171, %v81
    %v174 = vmul.f32 %v127, %v154
    %v175 = vmul.f32 %v129, %v169
    %v176 = vmul.f32 %v174, %v82
    %v177 = vmul.f32 %v175, %v83
    %v178 = vadd.f32 %v172, %v176
    %v179 = vadd.f32 %v173, %v177
    %v180 = vmul.f32 %v133, %v154
    %v181 = vmul.f32 %v135, %v169
    %v182 = vmul.f32 %v180, %v84
    %v183 = vmul.f32 %v181, %v85
    %v184 = vadd.f32 %v178, %v182
    %v185 = vadd.f32 %v179, %v183
    %186 = vst.msk [vmem:[#allocation10] sm:$0xff] %vm91, %v184
    %187 = vst.msk [vmem:[#allocation10 + $0x8] sm:$0xff] %vm91, %v185
    // Predicated region
    $region34: #{tpu_custom_call.1} parent=1 // pred_check
      _
    $region35: #{tpu_custom_call.1} parent=1 // pred_check_branch
      %189 = sbr.rel (0) target = $region37
    $region36: #{tpu_custom_call.1} parent=1 // pred_region
      %191 = vsyncadd [#allocation4], 0
      %s192 = sshll.u32 [#allocation10], 4
      %s193 = int_to_ptr.vmem [resolvable:$true] %s192
      %s194 = sshll.u32 %s4, 4
      %s195 = int_to_ptr.hbm [resolvable:$true] %s194
      %200 = dma.vmem_to_hbm [thread:$0]  %s193, 256, %s195, [#allocation4], 128, 128, 8
    $region37: #{tpu_custom_call.1} parent=1 // pred_fallthru
      _
    // Predicated region
    $region38: #{tpu_custom_call.1} parent=1 // pred_check
      _
    $region39: #{tpu_custom_call.1} parent=1 // pred_check_branch
      %202 = sbr.rel (0) target = $region41
    $region40: #{tpu_custom_call.1} parent=1 // pred_region
      %204 = dma.done [#allocation4], 256
    $region41: #{tpu_custom_call.1} parent=1 // pred_fallthru
      _
    %205 = vsyncpa [#allocation3], 1
    %206 = vsyncpa [#allocation6], 1
    %207 = vsyncpa [#allocation9], 1
    %208 = vsyncpa [#allocation4], 1

</llo_original>
